<compile_context>
chip_gen: v7x
topology: tpu7x:2x2x1
jax: 0.10.0
libtpu: 0.0.40
codegen_flags: <defaults>
</compile_context>

<pallas_src>
import jax
import jax.numpy as jnp
from jax.experimental import pallas as pl
from jax.experimental.pallas import tpu as pltpu


# --------------------------------------------------------------------------
# Kernels
# --------------------------------------------------------------------------

def lm_head_kernel(x_ref, wlm_ref, blm_ref, logits_ref):
    # bf16 x bf16 MXU matmul, f32 accumulation; bias added in f32.
    logits_ref[...] = (
        jnp.dot(x_ref[...], wlm_ref[...], preferred_element_type=jnp.float32)
        + blm_ref[...].astype(jnp.float32)
    )


def task_layer_kernel(x_ref, w0_ref, b0_ref, w1_ref, b1_ref, cls_ref, emb_ref):
    x = x_ref[...]                                               # [B, H] bf16

    # --- TaskLayer.custom_linear_0 (bf16 Linear H -> K), f32 accumulate ---
    emb_f32 = jnp.dot(x, w0_ref[...], preferred_element_type=jnp.float32)
    emb_f32 = emb_f32 + b0_ref[...].astype(jnp.float32)
    emb_ref[...] = emb_f32.astype(jnp.bfloat16)                  # returned embedding

    # --- Dropout (identity: eval mode) + GELU ---
    # TODO(synk): nn.GELU() default is exact erf; tanh approximation used here
    # (EUP path) — delta is below bf16 resolution at these activation scales.
    g = jax.nn.gelu(emb_f32, approximate=True)                   # [B, K] f32

    # --- TaskLayer.custom_linear_1 (bf16 Linear K -> 1) ---
    # VPU multiply + cross-lane reduction instead of an N=1 MXU matmul.
    w1_row = w1_ref[...].astype(jnp.float32)                     # [1, K]
    y = jnp.sum(g * w1_row, axis=-1, keepdims=True)              # [B, 1] f32 (XLU)
    y = y + b1_ref[...].astype(jnp.float32)
    cls_ref[...] = y.astype(jnp.bfloat16)


def fused_head_kernel(x_ref, wlm_ref, blm_ref, w0_ref, b0_ref, w1_ref, b1_ref,
                      logits_ref, cls_ref, emb_ref):
    """LM head tile every grid step; TaskLayer once on step 0 (single-TC path)."""
    x = x_ref[...]                                               # [B, H] bf16

    logits_ref[...] = (
        jnp.dot(x, wlm_ref[...], preferred_element_type=jnp.float32)
        + blm_ref[...].astype(jnp.float32)
    )

    @pl.when(pl.program_id(0) == 0)
    def _():
        emb_f32 = jnp.dot(x, w0_ref[...], preferred_element_type=jnp.float32)
        emb_f32 = emb_f32 + b0_ref[...].astype(jnp.float32)
        emb_ref[...] = emb_f32.astype(jnp.bfloat16)
        g = jax.nn.gelu(emb_f32, approximate=True)
        w1_row = w1_ref[...].astype(jnp.float32)
        y = jnp.sum(g * w1_row, axis=-1, keepdims=True)
        y = y + b1_ref[...].astype(jnp.float32)
        cls_ref[...] = y.astype(jnp.bfloat16)


# --------------------------------------------------------------------------
# Generation-aware configuration
# --------------------------------------------------------------------------

def _tpu_head_config():
    """Returns (vmem_budget_bytes, multi_tc) for the current backend.

    v5e/v6e: single TensorCore, 128 MiB VMEM  -> 96 MiB budget, no megacore.
    v7x:     two TensorCores,   64 MiB VMEM/TC -> 48 MiB budget, megacore.
    Unknown: conservative 48 MiB budget, assume megacore (always correct).
    """
    kind = ""
    try:
        kind = (jax.devices()[0].device_kind or "").lower()
    except Exception:
        pass
    single_tc = any(t in kind for t in
                    ("v5e", "v5 lite", "v5lite", "v6e", "v6 lite", "v6lite", "trillium"))
    if single_tc:
        return 96 * 1024 * 1024, False
    if "7" in kind:
        return 48 * 1024 * 1024, True
    return 48 * 1024 * 1024, True


def _round_down_128(x):
    return (x // 128) * 128


def _choose_tile_n(V, H, BP, vmem_budget, want_two_tiles):
    """Largest lane-dense vocab tile whose double-buffered working set fits the budget."""
    if V <= 128:
        return V
    # Per vocab column, double-buffered: bf16 weight column + f32 logits column + bf16 bias.
    per_col = 2 * (2 * H + 4 * BP + 2)
    usable = int(vmem_budget * 0.70) - BP * H * 2           # x is grid-invariant & tiny
    cap = max(128, _round_down_128(max(usable, 0) // per_col))
    tile_n = min(cap, max(128, _round_down_128(V)))
    if want_two_tiles and V >= 256:
        # Guarantee grid_v >= 2 so both TensorCores get work on megacore parts.
        half = ((-(-V // 2) + 127) // 128) * 128
        tile_n = min(tile_n, max(128, half))
    return tile_n


# --------------------------------------------------------------------------
# Wrapper
# --------------------------------------------------------------------------

def forward_head(last_hidden, w0, b0, w1_row, b1, wlm, blm, *,
                 tile_n=None, fuse_task_layer=None, vmem_limit_bytes=None):
    """Post-backbone head. Returns (cls [B] bf16, logits [B,V] f32, embedding [B,K] bf16)."""
    B, H = last_hidden.shape
    K = w0.shape[1]
    V = wlm.shape[1]

    vmem_budget, multi_tc = _tpu_head_config()
    if vmem_limit_bytes is None:
        vmem_limit_bytes = vmem_budget
    if fuse_task_layer is None:
        fuse_task_layer = not multi_tc      # fuse on single-TC generations only

    # LM-head weights/bias stream in bf16: half the HBM bytes + native bf16 MXU path.
    # TODO(synk): for a further ~2x on this HBM-bound weight stream, store wlm as
    # int8 (v5e/v6e MXU) or fp8-e4m3 (v7x MXU) with per-channel scales, accuracy permitting.
    if wlm.dtype != jnp.bfloat16:
        wlm = wlm.astype(jnp.bfloat16)
    if blm.dtype != jnp.bfloat16:
        blm = blm.astype(jnp.bfloat16)

    # bf16 vregs pack (16, 128): pad the batch (sublane) dim to a multiple of 16.
    BP = max(16, ((B + 15) // 16) * 16)
    x = jnp.pad(last_hidden, ((0, BP - B), (0, 0))) if BP != B else last_hidden

    # Vocab tile: lane-dense multiple of 128, sized from real per-column VMEM cost.
    want_two_tiles = multi_tc and not fuse_task_layer
    if V <= 128:
        tile_n = V
    elif tile_n is None:
        tile_n = _choose_tile_n(V, H, BP, vmem_limit_bytes, want_two_tiles)
    else:
        tile_n = max(128, min(_round_down_128(tile_n), max(128, _round_down_128(V))))
    grid_v = pl.cdiv(V, tile_n)

    if fuse_task_layer:
        # ---- single pallas_call: LM-head tiles + TaskLayer on grid step 0 ----
        logits_full, cls2d, emb_full = pl.pallas_call(
            fused_head_kernel,
            out_shape=(jax.ShapeDtypeStruct((BP, V), jnp.float32),
                       jax.ShapeDtypeStruct((BP, 1), jnp.bfloat16),
                       jax.ShapeDtypeStruct((BP, K), jnp.bfloat16)),
            grid_spec=pltpu.PrefetchScalarGridSpec(
                num_scalar_prefetch=0,
                grid=(grid_v,),
                in_specs=[
                    pl.BlockSpec((BP, H), lambda j: (0, 0)),        # activations (resident)
                    pl.BlockSpec((H, tile_n), lambda j: (0, j)),    # lm weight tile (dbl-buf)
                    pl.BlockSpec((1, tile_n), lambda j: (0, j)),    # lm bias tile (bf16)
                    pl.BlockSpec((H, K), lambda j: (0, 0)),         # task w0 (resident)
                    pl.BlockSpec((1, K), lambda j: (0, 0)),         # task b0
                    pl.BlockSpec((1, K), lambda j: (0, 0)),         # task w1 row
                    pl.BlockSpec((1, 1), lambda j: (0, 0)),         # task b1
                ],
                out_specs=(pl.BlockSpec((BP, tile_n), lambda j: (0, j)),
                           pl.BlockSpec((BP, 1), lambda j: (0, 0)),
                           pl.BlockSpec((BP, K), lambda j: (0, 0))),
            ),
            compiler_params=pltpu.CompilerParams(
                dimension_semantics=("arbitrary",),   # single-TC: grid is a serial loop
                vmem_limit_bytes=vmem_limit_bytes,
            ),
        )(x, wlm, blm, w0, b0, w1_row, b1)
        return cls2d[:B, 0], logits_full[:B], emb_full[:B]

    # ---------------- LM head: tiled over vocab, megacore-parallel ----------------
    logits_full = pl.pallas_call(
        lm_head_kernel,
        out_shape=jax.ShapeDtypeStruct((BP, V), jnp.float32),
        grid_spec=pltpu.PrefetchScalarGridSpec(
            num_scalar_prefetch=0,
            grid=(grid_v,),
            in_specs=[
                pl.BlockSpec((BP, H), lambda j: (0, 0)),        # activations (VMEM-resident)
                pl.BlockSpec((H, tile_n), lambda j: (0, j)),    # weight tile (double-buffered)
                pl.BlockSpec((1, tile_n), lambda j: (0, j)),    # bias tile (bf16)
            ],
            out_specs=pl.BlockSpec((BP, tile_n), lambda j: (0, j)),
        ),
        compiler_params=pltpu.CompilerParams(
            dimension_semantics=("parallel",),   # v7x: both TensorCores split vocab tiles
            vmem_limit_bytes=vmem_limit_bytes,
        ),
    )(x, wlm, blm)

    # ---------------- TaskLayer: tiny, single grid step ----------------
    cls2d, emb_full = pl.pallas_call(
        task_layer_kernel,
        out_shape=(jax.ShapeDtypeStruct((BP, 1), jnp.bfloat16),
                   jax.ShapeDtypeStruct((BP, K), jnp.bfloat16)),
        grid_spec=pltpu.PrefetchScalarGridSpec(
            num_scalar_prefetch=0,
            grid=(1,),
            in_specs=[
                pl.BlockSpec((BP, H), lambda i: (0, 0)),
                pl.BlockSpec((H, K), lambda i: (0, 0)),
                pl.BlockSpec((1, K), lambda i: (0, 0)),
                pl.BlockSpec((1, K), lambda i: (0, 0)),
                pl.BlockSpec((1, 1), lambda i: (0, 0)),
            ],
            out_specs=(pl.BlockSpec((BP, 1), lambda i: (0, 0)),
                       pl.BlockSpec((BP, K), lambda i: (0, 0))),
        ),
        compiler_params=pltpu.CompilerParams(dimension_semantics=("arbitrary",)),
    )(x, w0, b0, w1_row, b1)

    return cls2d[:B, 0], logits_full[:B], emb_full[:B]


# --------------------------------------------------------------------------
# Self-test
# --------------------------------------------------------------------------

if __name__ == "__main__":
    key = jax.random.PRNGKey(0)
    B, S, H, K, V = 2, 8, 32, 128, 256   # batch, seq, hidden_size, embedding_size k, vocab
    ks = jax.random.split(key, 8)

    input_ids = jax.random.randint(ks[0], (B, S), 0, V)
    attention_mask = jnp.ones((B, S), dtype=jnp.int32)

    # TODO(synk): the HF AutoModelForCausalLM transformer stack has no clean Pallas
    # equivalent here; it is replaced by a deterministic synthetic embedding table
    # producing hidden_states[-1][:, -1, :]. Only the post-backbone math (TaskLayer
    # + LM head) is the Pallas hot path, which matches the module's own compute.
    embed_table = (0.02 * jax.random.normal(ks[1], (V, H), jnp.float32)).astype(jnp.bfloat16)
    last_hidden = embed_table[input_ids[:, -1]]                  # [B, H] bf16

    # TaskLayer parameters (bf16, [in, out] layout; K->1 weight as a (1, K) row)
    w0 = (jax.random.normal(ks[2], (H, K)) / jnp.sqrt(H)).astype(jnp.bfloat16)
    b0 = (0.01 * jax.random.normal(ks[3], (1, K))).astype(jnp.bfloat16)
    w1_row = (jax.random.normal(ks[4], (1, K)) / jnp.sqrt(K)).astype(jnp.bfloat16)
    b1 = (0.01 * jax.random.normal(ks[5], (1, 1))).astype(jnp.bfloat16)

    # Synthetic LM head (stands in for pretrained_model.lm_head); bf16 weights.
    wlm = (0.02 * jax.random.normal(ks[6], (H, V))).astype(jnp.bfloat16)
    blm = jnp.zeros((1, V), jnp.float32)

    # Pure-JAX reference (f32 math, same tanh GELU).
    xf = last_hidden.astype(jnp.float32)
    ref_emb = xf @ w0.astype(jnp.float32) + b0.astype(jnp.float32)
    ref_g = jax.nn.gelu(ref_emb, approximate=True)
    ref_cls = (ref_g * w1_row.astype(jnp.float32)).sum(-1) + b1.astype(jnp.float32)[0, 0]
    ref_logits = xf @ wlm.astype(jnp.float32) + blm

    def check(cls, logits, embedding):
        assert cls.shape == (B,) and cls.dtype == jnp.bfloat16
        assert logits.shape == (B, V) and logits.dtype == jnp.float32
        assert embedding.shape == (B, K) and embedding.dtype == jnp.bfloat16
        assert jnp.allclose(cls.astype(jnp.float32), ref_cls, rtol=5e-2, atol=5e-2)
        assert jnp.allclose(logits, ref_logits, rtol=5e-2, atol=5e-2)
        assert jnp.allclose(embedding.astype(jnp.float32), ref_emb, rtol=5e-2, atol=5e-2)

    # Exercise both code paths (each is correct on any generation; the auto
    # selection only changes which one is fastest on the current chip).
    out_split = forward_head(last_hidden, w0, b0, w1_row, b1, wlm, blm,
                             fuse_task_layer=False, tile_n=128)   # 2 vocab tiles
    jax.block_until_ready(out_split)
    check(*out_split)

    out_fused = forward_head(last_hidden, w0, b0, w1_row, b1, wlm, blm,
                             fuse_task_layer=True)                # auto tile, fused TaskLayer
    jax.block_until_ready(out_fused)
    check(*out_fused)

    # Auto configuration (what a real deployment would call).
    cls, logits, embedding = forward_head(last_hidden, w0, b0, w1_row, b1, wlm, blm)
    jax.block_until_ready((cls, logits, embedding))
    check(cls, logits, embedding)

    print("KERNEL_OK")
</pallas_src>

<mosaic_0001>
module attributes {stable_mosaic.version = 11 : i64} {
  func.func @lm_head_kernel(%arg0: i32, %arg1: memref<16x32xbf16, #tpu.memory_space<vmem>>, %arg2: memref<32x128xbf16, #tpu.memory_space<vmem>>, %arg3: memref<1x128xbf16, #tpu.memory_space<vmem>>, %arg4: memref<16x128xf32, #tpu.memory_space<vmem>>) attributes {dimension_semantics = [#tpu.dimension_semantics<parallel>], iteration_bounds = array<i64: 2>, scalar_prefetch = 0 : i64, scratch_operands = 0 : i64, tpu.core_type = #tpu.core_type<tc>, window_params = [{pipeline_mode = #tpu.pipeline_mode<synchronous>, transform_indices = @transform_0, window_bounds = array<i64: 16, 32>}, {transform_indices = @transform_1, window_bounds = array<i64: 32, 128>}, {transform_indices = @transform_2, window_bounds = array<i64: 1, 128>}, {transform_indices = @transform_3, window_bounds = array<i64: 16, 128>}]} {
    %c0 = arith.constant 0 : index
    %c0_0 = arith.constant 0 : index
    %0 = vector.load %arg1[%c0, %c0_0] : memref<16x32xbf16, #tpu.memory_space<vmem>>, vector<16x32xbf16>
    %c0_1 = arith.constant 0 : index
    %c0_2 = arith.constant 0 : index
    %1 = vector.load %arg2[%c0_1, %c0_2] : memref<32x128xbf16, #tpu.memory_space<vmem>>, vector<32x128xbf16>
    %cst = arith.constant dense<0.000000e+00> : vector<16x128xf32>
    %2 = tpu.matmul %0, %1, %cst {dimension_numbers = #tpu.dot_dimension_numbers<[1], [0], [0], [1], [0, 0, 1, 1], [], []>} : vector<16x32xbf16>, vector<32x128xbf16>, vector<16x128xf32> -> vector<16x128xf32>
    %c0_3 = arith.constant 0 : index
    %c0_4 = arith.constant 0 : index
    %3 = vector.load %arg3[%c0_3, %c0_4] : memref<1x128xbf16, #tpu.memory_space<vmem>>, vector<1x128xbf16>
    %4 = arith.extf %3 : vector<1x128xbf16> to vector<1x128xf32>
    %5 = vector.broadcast %4 : vector<1x128xf32> to vector<16x128xf32>
    %6 = arith.addf %2, %5 : vector<16x128xf32>
    %c0_5 = arith.constant 0 : index
    %c0_6 = arith.constant 0 : index
    %7 = vector.load %arg4[%c0_5, %c0_6] : memref<16x128xf32, #tpu.memory_space<vmem>>, vector<16x128xf32>
    tpu.vector_store %arg4[%c0_5, %c0_6], %6 {strides = array<i32>} : memref<16x128xf32, #tpu.memory_space<vmem>>, vector<16x128xf32>,
    return
  }
  func.func @transform_0(%arg0: i32) -> (i32, i32) {
    %c0_i32 = arith.constant 0 : i32
    %c0_i32_0 = arith.constant 0 : i32
    %c0_i32_1 = arith.constant 0 : i32
    return %c0_i32, %c0_i32_0 : i32, i32
  }
  func.func @transform_1(%arg0: i32) -> (i32, i32) {
    %c0_i32 = arith.constant 0 : i32
    %c0_i32_0 = arith.constant 0 : i32
    return %c0_i32, %arg0 : i32, i32
  }
  func.func @transform_2(%arg0: i32) -> (i32, i32) {
    %c0_i32 = arith.constant 0 : i32
    %c0_i32_0 = arith.constant 0 : i32
    return %c0_i32, %arg0 : i32, i32
  }
  func.func @transform_3(%arg0: i32) -> (i32, i32) {
    %c0_i32 = arith.constant 0 : i32
    %c0_i32_0 = arith.constant 0 : i32
    return %c0_i32, %arg0 : i32, i32
  }
}

</mosaic_0001>

<llo_original>
// kernel: tpu_custom_call.1
$region0: #{tpu_custom_call.1}
  #allocation0 [shape = 'u32[]', space=smem, size = 0x4, offset = 0x4, fixed_abs, tag = 'smem constant byte address 0x4 - core index']
  #allocation1 [shape = 'u32[144,128]{1,0:T(1,128)}', space=vmem, size = 0x12000, scoped, tag = 'internal scratch']
  %s0 = inlined_call_operand.hbm [shape: bf16[16,32], index: 0, kind: input, shape index: {}]
  %s1 = inlined_call_operand.hbm [shape: bf16[32,256], index: 1, kind: input, shape index: {}]
  %s2 = inlined_call_operand.vmem [shape: bf16[1,256], index: 2, kind: input, shape index: {}]
  %s3 = inlined_call_operand.hbm [shape: f32[16,256], index: 3, kind: output, shape index: {}]
  %s4 = sld [smem:[#allocation0]]
  $region53: #{tpu_custom_call.1} parent=0
    _
  %s6 = ssub.s32 1, %s4
  %s7 = scalar_select 0, %s6, %s4
  $region1: #{tpu_custom_call.1} parent=0
    #allocation2 [shape = 'u8[4096]{0}', space=vmem, size = 0x1000, scoped, tag = 'input window, operand 0, single buffered']
    #allocation3 [shape = 's32[2]{0}', space=sflag, size = 0x8, scoped, tag = 'scoped memory for tpu_custom_call.1']
    #allocation4 [shape = 's32[2]{0}', space=sflag, size = 0x8, scoped, tag = 'scoped memory for tpu_custom_call.1']
    #allocation5 [shape = 'u8[16384]{0}', space=vmem, size = 0x4000, scoped, tag = 'input window, operand 1']
    #allocation6 [shape = 's32[2]{0}', space=sflag, size = 0x8, scoped, tag = 'scoped memory for tpu_custom_call.1']
    #allocation7 [shape = 'u8[16384]{0}', space=vmem, size = 0x4000, scoped, tag = 'output window, operand 0']
    %8 = vsyncpa [#allocation3], 0
    %9 = vsyncpa [#allocation6], 0
    %s10 = scalar_lea.sflag [#allocation6], 1
    %11 = vsyncpa %s10, 0
    %12 = vsyncpa [#allocation4], 0
    %s13 = scalar_lea.sflag [#allocation4], 1
    %14 = vsyncpa %s13, 0
    loop: start=0, step=1, limit=4
    $region2: #{tpu_custom_call.1} parent=1 // loop_pre_header
      _
    $region3: #{tpu_custom_call.1} parent=1 // loop_header
      %s16 = sphi 0, %s20
      %p17 = scmp.ge.s32.totalorder %s16, 4
      %s24 = sphi 0, %s24
      %s26 = sphi 0, %s24
      %s27 = sphi 0, %s26
      %s41 = sphi 0, %s27
      %s47 = sphi 0, %s49
      %s50 = sphi 0, %s47
      %s51 = sphi 0, %s50
      %s67 = sphi 0, %s51
      %s73 = sphi 0, %s75
      %s76 = sphi 0, %s73
      %s77 = sphi 0, %s76
      %s93 = sphi 0, %s77
      %s99 = sphi 0, %s101
      %s102 = sphi 0, %s99
      %s103 = sphi 0, %s102
      %s119 = sphi 0, %s103
    $region4: #{tpu_custom_call.1} parent=1 // loop_header_branch
      %19 = sbr.rel (%p17) target = $region8
    $region5: #{tpu_custom_call.1} parent=1 // loop_body
      %s21 = ssub.s32 %s16, 1
      %s22 = ssub.s32 %s16, 2
      %s23 = sadd.s32 %s16, 1
      %s25 = sadd.s32 %s24, 1
      %p28 = scmp.eq.s32.totalorder %s16, 1
      %p29 = scmp.ne.s32.totalorder %s24, %s26
      %p30 = scmp.eq.s32.totalorder %s16, 0
      %p31 = por %p29, %p30
      %p32 = scmp.ne.s32.totalorder %s24, %s26
      %p33 = scmp.eq.s32.totalorder %s21, 1
      %p34 = por %p32, %p33
      %p35 = scmp.ne.s32.totalorder %s26, %s27
      %p36 = scmp.eq.s32.totalorder %s21, 0
      %p37 = por %p35, %p36
      %p38 = scmp.ne.s32.totalorder %s26, %s27
      %p39 = scmp.eq.s32.totalorder %s22, 1
      %p40 = por %p38, %p39
      %p42 = scmp.ne.s32.totalorder %s27, %s41
      %p43 = scmp.eq.s32.totalorder %s22, 0
      %p44 = por %p42, %p43
      %s45 = ssub.s32 %s16, %s23
      %p46 = scmp.eq.s32.totalorder %s45, 0
      %s48 = sadd.s32 %s47, 1
      %s49 = scalar_select %p46, %s47, %s48
      %p52 = pneg %p46
      %p53 = scmp.eq.s32.totalorder %s16, 1
      %p54 = por %p52, %p53
      %p55 = scmp.ne.s32.totalorder %s47, %s50
      %p56 = scmp.eq.s32.totalorder %s16, 0
      %p57 = por %p55, %p56
      %p58 = scmp.ne.s32.totalorder %s47, %s50
      %p59 = scmp.eq.s32.totalorder %s21, 1
      %p60 = por %p58, %p59
      %p61 = scmp.ne.s32.totalorder %s50, %s51
      %p62 = scmp.eq.s32.totalorder %s21, 0
      %p63 = por %p61, %p62
      %p64 = scmp.ne.s32.totalorder %s50, %s51
      %p65 = scmp.eq.s32.totalorder %s22, 1
      %p66 = por %p64, %p65
      %p68 = scmp.ne.s32.totalorder %s51, %s67
      %p69 = scmp.eq.s32.totalorder %s22, 0
      %p70 = por %p68, %p69
      %s71 = ssub.s32 %s16, %s23
      %p72 = scmp.eq.s32.totalorder %s71, 0
      %s74 = sadd.s32 %s73, 1
      %s75 = scalar_select %p72, %s73, %s74
      %p78 = pneg %p72
      %p79 = scmp.eq.s32.totalorder %s16, 1
      %p80 = por %p78, %p79
      %p81 = scmp.ne.s32.totalorder %s73, %s76
      %p82 = scmp.eq.s32.totalorder %s16, 0
      %p83 = por %p81, %p82
      %p84 = scmp.ne.s32.totalorder %s73, %s76
      %p85 = scmp.eq.s32.totalorder %s21, 1
      %p86 = por %p84, %p85
      %p87 = scmp.ne.s32.totalorder %s76, %s77
      %p88 = scmp.eq.s32.totalorder %s21, 0
      %p89 = por %p87, %p88
      %p90 = scmp.ne.s32.totalorder %s76, %s77
      %p91 = scmp.eq.s32.totalorder %s22, 1
      %p92 = por %p90, %p91
      %p94 = scmp.ne.s32.totalorder %s77, %s93
      %p95 = scmp.eq.s32.totalorder %s22, 0
      %p96 = por %p94, %p95
      %s97 = ssub.s32 %s16, %s23
      %p98 = scmp.eq.s32.totalorder %s97, 0
      %s100 = sadd.s32 %s99, 1
      %s101 = scalar_select %p98, %s99, %s100
      %p104 = pneg %p98
      %p105 = scmp.eq.s32.totalorder %s16, 1
      %p106 = por %p104, %p105
      %p107 = scmp.ne.s32.totalorder %s99, %s102
      %p108 = scmp.eq.s32.totalorder %s16, 0
      %p109 = por %p107, %p108
      %p110 = scmp.ne.s32.totalorder %s99, %s102
      %p111 = scmp.eq.s32.totalorder %s21, 1
      %p112 = por %p110, %p111
      %p113 = scmp.ne.s32.totalorder %s102, %s103
      %p114 = scmp.eq.s32.totalorder %s21, 0
      %p115 = por %p113, %p114
      %p116 = scmp.ne.s32.totalorder %s102, %s103
      %p117 = scmp.eq.s32.totalorder %s22, 1
      %p118 = por %p116, %p117
      %p120 = scmp.ne.s32.totalorder %s103, %s119
      %p121 = scmp.eq.s32.totalorder %s22, 0
      %p122 = por %p120, %p121
      %p123 = scmp.le.s32.totalorder 1, %s16
      %p124 = scmp.lt.s32.totalorder %s16, 3
      %p125 = pnand %p123, %p124
      %p126 = pneg %p125
      // Predicated region
      $region9: #{tpu_custom_call.1} parent=5 // pred_check
        _
      $region10: #{tpu_custom_call.1} parent=5 // pred_check_branch
        %128 = sbr.rel (%p125) target = $region12
      $region11: #{tpu_custom_call.1} parent=5 // pred_region
        %s129 = ssub.s32 %s16, 1
        // Predicated region
        $region13: #{tpu_custom_call.1} parent=11 // pred_check
          %p130 = pneg %p37
        $region14: #{tpu_custom_call.1} parent=11 // pred_check_branch
          %132 = sbr.rel (%p130) target = $region16
        $region15: #{tpu_custom_call.1} parent=11 // pred_region
          %s134 = ssub.s32 128, 128
          %135 = vsyncadd [#allocation3], %s134
          %s136 = sshll.u32 [#allocation2], 4
          %s137 = int_to_ptr.vmem [resolvable:$true] %s136
          %142 = dma.hbm_to_vmem [thread:$0]  %s0, 128, %s137, [#allocation3], 64, 64, 4
        $region16: #{tpu_custom_call.1} parent=11 // pred_fallthru
          _
      $region12: #{tpu_custom_call.1} parent=5 // pred_fallthru
        _
      %p143 = scmp.lt.s32.totalorder %s16, 2
      // Predicated region
      $region17: #{tpu_custom_call.1} parent=5 // pred_check
        %p144 = pneg %p143
      $region18: #{tpu_custom_call.1} parent=5 // pred_check_branch
        %146 = sbr.rel (%p144) target = $region20
      $region19: #{tpu_custom_call.1} parent=5 // pred_region
        // Predicated region
        $region21: #{tpu_custom_call.1} parent=19 // pred_check
          %p147 = pneg %p57
        $region22: #{tpu_custom_call.1} parent=19 // pred_check_branch
          %149 = sbr.rel (%p147) target = $region24
        $region23: #{tpu_custom_call.1} parent=19 // pred_region
          %s150 = sand.u32 %s47, 1
          %s151 = scalar_lea.sflag [#allocation6], %s150
          %s152 = sand.u32 %s47, 1
          %s153 = smul.addr %s152, 16
          %s154 = scalar_lea.vmem [#allocation5], %s153
          %s156 = ssub.s32 256, 256
          %157 = vsyncadd %s151, %s156
          %s158 = smul.addr %s16, 64
          %s159 = scalar_lea.hbm %s1, %s158
          %s160 = sshll.u32 %s154, 4
          %s161 = int_to_ptr.vmem [resolvable:$true] %s160
          %166 = dma.hbm_to_vmem [thread:$0]  %s159, 256, %s161, %s151, 128, 64, 4
        $region24: #{tpu_custom_call.1} parent=19 // pred_fallthru
          _
        // Predicated region
        $region25: #{tpu_custom_call.1} parent=19 // pred_check
          %p167 = pneg %p83
        $region26: #{tpu_custom_call.1} parent=19 // pred_check_branch
          %169 = sbr.rel (%p167) target = $region28
        $region27: #{tpu_custom_call.1} parent=19 // pred_region
          %p170 = scmp.lt.s32.totalorder %s16, 1
          %s171 = scalar_select %p170, %s16, 1
          %s172 = scalar_lea.vmem %s2, %s171
        $region28: #{tpu_custom_call.1} parent=19 // pred_fallthru
          _
      $region20: #{tpu_custom_call.1} parent=5 // pred_fallthru
        _
      %p173 = scmp.le.s32.totalorder 1, %s16
      %p174 = scmp.lt.s32.totalorder %s16, 3
      %p175 = pnand %p173, %p174
      %p176 = pneg %p175
      // Predicated region
      $region29: #{tpu_custom_call.1} parent=5 // pred_check
        _
      $region30: #{tpu_custom_call.1} parent=5 // pred_check_branch
        %178 = sbr.rel (%p175) target = $region32
      $region31: #{tpu_custom_call.1} parent=5 // pred_region
        %s179 = ssub.s32 %s16, 1
        // Predicated region
        $region33: #{tpu_custom_call.1} parent=31 // pred_check
          %p180 = pneg %p37
        $region34: #{tpu_custom_call.1} parent=31 // pred_check_branch
          %182 = sbr.rel (%p180) target = $region36
        $region35: #{tpu_custom_call.1} parent=31 // pred_region
          %183 = dma.done [#allocation3], 128
        $region36: #{tpu_custom_call.1} parent=31 // pred_fallthru
          _
        %s184 = sand.u32 %s50, 1
        %s185 = scalar_lea.sflag [#allocation6], %s184
        %s186 = sand.u32 %s50, 1
        %s187 = smul.addr %s186, 16
        %s188 = scalar_lea.vmem [#allocation5], %s187
        // Predicated region
        $region37: #{tpu_custom_call.1} parent=31 // pred_check
          %p189 = pneg %p63
        $region38: #{tpu_custom_call.1} parent=31 // pred_check_branch
          %191 = sbr.rel (%p189) target = $region40
        $region39: #{tpu_custom_call.1} parent=31 // pred_region
          %192 = dma.done %s185, 256
        $region40: #{tpu_custom_call.1} parent=31 // pred_fallthru
          _
        %p193 = pneg %p37
        %p194 = pneg %p34
        %s195 = sand.u32 %s50, 1
        %s196 = scalar_lea.sflag [#allocation6], %s195
        %s197 = sand.u32 %s50, 1
        %s198 = smul.addr %s197, 16
        %s199 = scalar_lea.vmem [#allocation5], %s198
        %p200 = pneg %p63
        %p201 = pneg %p60
        %p202 = scmp.lt.s32.totalorder %s21, 1
        %s203 = scalar_select %p202, %s21, 1
        %s204 = scalar_lea.vmem %s2, %s203
        %p205 = pneg %p89
        %p206 = pneg %p86
        %p207 = pneg %p115
        %p208 = pneg %p112
        %s209 = sand.u32 %s102, 1
        %s210 = scalar_lea.sflag [#allocation4], %s209
        %s211 = sand.u32 %s102, 1
        %s212 = smul.addr %s211, 16
        %s213 = scalar_lea.vmem [#allocation7], %s212
        %p214 = scmp.lt.s32.totalorder %s21, 1
        %s215 = scalar_select %p214, %s21, 1
        %s216 = scalar_lea.vmem %s2, %s215
        %v218 = vld [vmem:[#allocation2] sm:$0xf]
        %v219 = vld [vmem:[#allocation2 + $0x4] sm:$0xf]
        %v220 = vld [vmem:[%s188] sm:$0xf]
        %v221 = vld [vmem:[%s188 + $0x4] sm:$0xf]
        %v222 = vld [vmem:[%s188 + $0x8] sm:$0xf]
        %v223 = vld [vmem:[%s188 + $0xc] sm:$0xf]
        %v224 = vld [vmem:[%s216] sm:$0x1]
        %v225 = vunpack.c.l.bf16 %v224
        %v226 = vlaneseq
        %v227 = vshrl.u32 %v226, 7
        %v228 = vsub.s32 0, %v227
        %v229 = vrot.slane %v225, %v228
        %v232 = vunpack.c.l.b16 %v218
        %v233 = vunpack.c.l.b16 %v219
        %v234 = vpack.c.b16 %v233, %v232
        %v239 = vunpack.c.l.b16 %v220
        %v240 = vunpack.c.l.b16 %v221
        %v241 = vunpack.c.l.b16 %v222
        %v242 = vunpack.c.l.b16 %v223
        %v243 = vpack.c.b16 %v240, %v239
        %v244 = vpack.c.b16 %v242, %v241
        %vm247 = vcmask 261120
        %v249 = vsel %vm247, %v234, 0
        %251 = vmatprep.subr.bf16.mxu0 0
        %252 = vmatpush1.bf16.msra.mxu0 %v243
        %253 = vmatprep.subr.bf16.mxu0 0
        %254 = vmatpush1.bf16.msra.mxu0 %v244
        %255 = vmatprep.subr.bf16.mxu0 0
        %256 = vmatpush1.bf16.msra.mxu0 0
        %257 = vmatprep.subr.bf16.mxu0 0
        %258 = vmatpush1.bf16.msra.mxu0 0
        %259 = vmatprep.subr.bf16.mxu0 0
        %260 = vmatpush1.bf16.msra.mxu0 0
        %261 = vmatprep.subr.bf16.mxu0 0
        %262 = vmatpush1.bf16.msra.mxu0 0
        %263 = vmatprep.subr.bf16.mxu0 0
        %264 = vmatpush1.bf16.msra.mxu0 0
        %265 = vmatprep.subr.bf16.mxu0 0
        %266 = vmatpush1.bf16.msra.mxu0 0
        %267 = vmatprep.subr.bf16.mxu0 0
        %268 = vmatpush1.bf16.msra.mxu0 0
        %269 = vmatprep.subr.bf16.mxu0 0
        %270 = vmatpush1.bf16.msra.mxu0 0
        %271 = vmatprep.subr.bf16.mxu0 0
        %272 = vmatpush1.bf16.msra.mxu0 0
        %273 = vmatprep.subr.bf16.mxu0 0
        %274 = vmatpush1.bf16.msra.mxu0 0
        %275 = vmatprep.subr.bf16.mxu0 0
        %276 = vmatpush1.bf16.msra.mxu0 0
        %277 = vmatprep.subr.bf16.mxu0 0
        %278 = vmatpush1.bf16.msra.mxu0 0
        %279 = vmatprep.subr.bf16.mxu0 0
        %280 = vmatpush1.bf16.msra.mxu0 0
        %281 = vmatprep.subr.bf16.mxu0 0
        %282 = vmatpush1.bf16.msra.mxu0 0
        %283 = vmatprep.mubr.bf16.mxu0 0
        %284 = vmatmul.mubr.bf16.gmra.mrb[0].mxu0 %v249
        %v285 = vpop.f32.mrb[0].mxu0
        %v286 = vadd.f32 %v229, %v285
        %v287 = vpop.f32.mrb[0].mxu0
        %v288 = vpop.f32.mrb[0].mxu0
        %v289 = vadd.f32 %v229, %v288
        %v290 = vpop.f32.mrb[0].mxu0
        %291 = vdwg.mxu0
        %292 = vst [vmem:[%s213] sm:$0xff] %v286
        %293 = vst [vmem:[%s213 + $0x8] sm:$0xff] %v289
        %s294 = sand.u32 %s102, 1
        %s295 = scalar_lea.sflag [#allocation4], %s294
        %s296 = sand.u32 %s102, 1
        %s297 = smul.addr %s296, 16
        %s298 = scalar_lea.vmem [#allocation7], %s297
        // Predicated region
        $region41: #{tpu_custom_call.1} parent=31 // pred_check
          %p299 = pneg %p112
        $region42: #{tpu_custom_call.1} parent=31 // pred_check_branch
          %301 = sbr.rel (%p299) target = $region44
        $region43: #{tpu_custom_call.1} parent=31 // pred_region
          %s303 = ssub.s32 256, 256
          %304 = vsyncadd %s295, %s303
          %s305 = smul.addr %s21, 128
          %s306 = scalar_lea.hbm %s3, %s305
          %s307 = sshll.u32 %s298, 4
          %s308 = int_to_ptr.vmem [resolvable:$true] %s307
          %313 = dma.vmem_to_hbm [thread:$0]  %s308, 256, %s306, %s295, 128, 256, 8
        $region44: #{tpu_custom_call.1} parent=31 // pred_fallthru
          _
      $region32: #{tpu_custom_call.1} parent=5 // pred_fallthru
        _
      %p314 = scmp.le.s32.totalorder 2, %s16
      // Predicated region
      $region45: #{tpu_custom_call.1} parent=5 // pred_check
        %p315 = pneg %p314
      $region46: #{tpu_custom_call.1} parent=5 // pred_check_branch
        %317 = sbr.rel (%p315) target = $region48
      $region47: #{tpu_custom_call.1} parent=5 // pred_region
        %s318 = ssub.s32 %s16, 2
        // Predicated region
        $region49: #{tpu_custom_call.1} parent=47 // pred_check
          %p319 = pneg %p118
        $region50: #{tpu_custom_call.1} parent=47 // pred_check_branch
          %321 = sbr.rel (%p319) target = $region52
        $region51: #{tpu_custom_call.1} parent=47 // pred_region
          %s322 = sand.u32 %s103, 1
          %s323 = scalar_lea.sflag [#allocation4], %s322
          %s324 = sand.u32 %s103, 1
          %s325 = smul.addr %s324, 16
          %s326 = scalar_lea.vmem [#allocation7], %s325
          %327 = dma.done %s323, 256
        $region52: #{tpu_custom_call.1} parent=47 // pred_fallthru
          _
      $region48: #{tpu_custom_call.1} parent=5 // pred_fallthru
        _
    $region6: #{tpu_custom_call.1} parent=1 // loop_footer
      %s20 = sadd.s32 1, %s16
    $region7: #{tpu_custom_call.1} parent=1 // loop_footer_branch
      %15 = sbr.rel target = $region3
    $region8: #{tpu_custom_call.1} parent=1 // loop_exit
      _
    %328 = vsyncpa [#allocation3], 1
    %s329 = scalar_lea.sflag [#allocation3], 1
    %330 = vsyncpa %s329, 1
    %331 = vsyncpa [#allocation6], 1
    %s332 = scalar_lea.sflag [#allocation6], 1
    %333 = vsyncpa %s332, 1
    %334 = vsyncpa [#allocation4], 1
    %s335 = scalar_lea.sflag [#allocation4], 1
    %336 = vsyncpa %s335, 1

</llo_original>
